<compile_context>
chip_gen: v7x
topology: tpu7x:2x2x1
jax: 0.10.0
libtpu: 0.0.40
codegen_flags: <defaults>
</compile_context>

<pallas_src>
import functools

import jax
import jax.numpy as jnp
from jax.experimental import pallas as pl
from jax.experimental.pallas import tpu as pltpu

_SMALL_NPAD = 1024  # everything fits in one VMEM-resident fused kernel below this


# ---------------------------------------------------------------------------
# Helpers
# ---------------------------------------------------------------------------

def _round_up(v, m):
    return (v + m - 1) // m * m


def _pad2(a, rows, cols):
    pr, pc = rows - a.shape[0], cols - a.shape[1]
    if pr == 0 and pc == 0:
        return a
    return jnp.pad(a, ((0, pr), (0, pc)))


def _vmem_limit_bytes():
    """~3/4 of physical VMEM: ~96 MiB on v5e/v6e (128 MiB), ~48 MiB on v7x (64 MiB)."""
    cap = 64 << 20
    try:
        info = pltpu.get_tpu_info()
        cap = int(getattr(info, "vmem_capacity_bytes", cap))
    except Exception:
        pass
    return min((cap * 3) // 4, 96 << 20)


def _pick_tile(npad, vmem_limit, cpad):
    """Largest adj tile (divisor of npad) whose propagate working set fits VMEM."""
    for t in (2048, 1024, 512, 256, 128):
        if npad % t:
            continue
        ws = (2 * t * t * 2            # adj tile, double-buffered, bf16
              + 2 * npad * cpad * 2    # resident P (conservatively x2), bf16
              + t * cpad * 4           # f32 accumulator
              + 2 * t * cpad * 2       # output block, double-buffered
              + (2 << 20))             # slack (weights, bias, code)
        if ws <= (vmem_limit * 3) // 4:
            return t
    return 128


# ---------------------------------------------------------------------------
# Kernels
# ---------------------------------------------------------------------------

def _fused_encoder_kernel(adj_ref, x_ref, w1_ref, b1_ref, w2_ref, b2_ref, out_ref):
    """Whole encoder for small graphs: one kernel, everything VMEM-resident."""
    p1 = jnp.dot(x_ref[...], w1_ref[...],
                 preferred_element_type=jnp.float32).astype(jnp.bfloat16)
    h = jnp.maximum(
        jnp.dot(adj_ref[...], p1, preferred_element_type=jnp.float32) + b1_ref[...],
        0.0,
    ).astype(jnp.bfloat16)
    p2 = jnp.dot(h, w2_ref[...],
                 preferred_element_type=jnp.float32).astype(jnp.bfloat16)
    out_ref[...] = (
        jnp.dot(adj_ref[...], p2, preferred_element_type=jnp.float32) + b2_ref[...]
    ).astype(out_ref.dtype)


def _xw_kernel(x_ref, w_ref, p_ref):
    """P = X @ W (bf16 operands on the MXU, f32 accumulation)."""
    p_ref[...] = jnp.dot(
        x_ref[...], w_ref[...], preferred_element_type=jnp.float32
    ).astype(p_ref.dtype)


def _prop_fuse_w2_kernel(adj_ref, p_ref, b_ref, w2_ref, out_ref, acc_ref, *, tk):
    """OUT = relu(A_hat @ P + b) @ W2, K-tiled; P and W2 are VMEM-resident."""
    k = pl.program_id(1)

    @pl.when(k == 0)
    def _():
        acc_ref[...] = jnp.zeros_like(acc_ref)

    kstart = pl.multiple_of(k * tk, tk)
    acc_ref[...] += jnp.dot(
        adj_ref[...], p_ref[pl.ds(kstart, tk), :], preferred_element_type=jnp.float32
    )

    @pl.when(k == pl.num_programs(1) - 1)
    def _():
        # Padded rows end up as relu(b1) @ W2 (non-zero); benign because the
        # padded adjacency COLUMNS of the next propagation are zero.
        h = jnp.maximum(acc_ref[...] + b_ref[...], 0.0).astype(jnp.bfloat16)
        out_ref[...] = jnp.dot(
            h, w2_ref[...], preferred_element_type=jnp.float32
        ).astype(out_ref.dtype)


def _prop_bias_kernel(adj_ref, p_ref, b_ref, out_ref, acc_ref, *, tk):
    """OUT = A_hat @ P + b, K-tiled; P is VMEM-resident."""
    k = pl.program_id(1)

    @pl.when(k == 0)
    def _():
        acc_ref[...] = jnp.zeros_like(acc_ref)

    kstart = pl.multiple_of(k * tk, tk)
    acc_ref[...] += jnp.dot(
        adj_ref[...], p_ref[pl.ds(kstart, tk), :], preferred_element_type=jnp.float32
    )

    @pl.when(k == pl.num_programs(1) - 1)
    def _():
        out_ref[...] = (acc_ref[...] + b_ref[...]).astype(out_ref.dtype)


# ---------------------------------------------------------------------------
# pallas_call wrappers
# ---------------------------------------------------------------------------

def _fused_small(adj_p, x_p, w1_p, b1_p, w2_p, b2_p, vmem_limit):
    npad = adj_p.shape[0]
    fpad = x_p.shape[1]
    hpad = w1_p.shape[1]
    opad = w2_p.shape[1]
    return pl.pallas_call(
        _fused_encoder_kernel,
        out_shape=jax.ShapeDtypeStruct((npad, opad), jnp.float32),
        grid_spec=pltpu.PrefetchScalarGridSpec(
            num_scalar_prefetch=0,
            grid=(1,),
            in_specs=[
                pl.BlockSpec((npad, npad), lambda i: (0, 0)),
                pl.BlockSpec((npad, fpad), lambda i: (0, 0)),
                pl.BlockSpec((fpad, hpad), lambda i: (0, 0)),
                pl.BlockSpec((1, hpad), lambda i: (0, 0)),
                pl.BlockSpec((hpad, opad), lambda i: (0, 0)),
                pl.BlockSpec((1, opad), lambda i: (0, 0)),
            ],
            out_specs=pl.BlockSpec((npad, opad), lambda i: (0, 0)),
        ),
        compiler_params=pltpu.CompilerParams(
            dimension_semantics=("arbitrary",),
            vmem_limit_bytes=vmem_limit,
        ),
    )(adj_p, x_p, w1_p, b1_p, w2_p, b2_p)


def _feature_transform(x_p, w_p, tm, vmem_limit):
    npad, fpad = x_p.shape
    cpad = w_p.shape[1]
    return pl.pallas_call(
        _xw_kernel,
        out_shape=jax.ShapeDtypeStruct((npad, cpad), jnp.bfloat16),
        grid_spec=pltpu.PrefetchScalarGridSpec(
            num_scalar_prefetch=0,
            grid=(npad // tm,),
            in_specs=[
                pl.BlockSpec((tm, fpad), lambda i: (i, 0)),
                pl.BlockSpec((fpad, cpad), lambda i: (0, 0)),
            ],
            out_specs=pl.BlockSpec((tm, cpad), lambda i: (i, 0)),
        ),
        compiler_params=pltpu.CompilerParams(
            dimension_semantics=("parallel",),
            vmem_limit_bytes=vmem_limit,
        ),
    )(x_p, w_p)


def _propagate_fused(adj_p, p_p, b1_p, w2_p, tm, tk, vmem_limit):
    """relu(A_hat @ P + b1) @ W2, adjacency tiled (row, K), H never hits HBM."""
    npad = adj_p.shape[0]
    hpad = p_p.shape[1]
    opad = w2_p.shape[1]
    flops = int(2 * npad * npad * hpad + 2 * npad * hpad * opad)
    bytes_accessed = int(
        npad * npad * 2 + npad * hpad * 2 + hpad * opad * 2 + npad * opad * 2
    )
    return pl.pallas_call(
        functools.partial(_prop_fuse_w2_kernel, tk=tk),
        out_shape=jax.ShapeDtypeStruct((npad, opad), jnp.bfloat16),
        grid_spec=pltpu.PrefetchScalarGridSpec(
            num_scalar_prefetch=0,
            grid=(npad // tm, npad // tk),
            in_specs=[
                pl.BlockSpec((tm, tk), lambda i, k: (i, k)),      # A_hat tile
                pl.BlockSpec((npad, hpad), lambda i, k: (0, 0)),  # P resident (DMA'd once)
                pl.BlockSpec((1, hpad), lambda i, k: (0, 0)),     # b1
                pl.BlockSpec((hpad, opad), lambda i, k: (0, 0)),  # W2 resident
            ],
            out_specs=pl.BlockSpec((tm, opad), lambda i, k: (i, 0)),
            scratch_shapes=[pltpu.VMEM((tm, hpad), jnp.float32)],
        ),
        compiler_params=pltpu.CompilerParams(
            dimension_semantics=("parallel", "arbitrary"),
            vmem_limit_bytes=vmem_limit,
        ),
        cost_estimate=pl.CostEstimate(
            flops=flops, transcendentals=0, bytes_accessed=bytes_accessed
        ),
    )(adj_p, p_p, b1_p, w2_p)


def _propagate(adj_p, p_p, b_p, tm, tk, vmem_limit):
    """A_hat @ P + b (f32 out), adjacency tiled (row, K), P VMEM-resident."""
    npad = adj_p.shape[0]
    cpad = p_p.shape[1]
    flops = int(2 * npad * npad * cpad)
    bytes_accessed = int(npad * npad * 2 + npad * cpad * 2 + npad * cpad * 4)
    return pl.pallas_call(
        functools.partial(_prop_bias_kernel, tk=tk),
        out_shape=jax.ShapeDtypeStruct((npad, cpad), jnp.float32),
        grid_spec=pltpu.PrefetchScalarGridSpec(
            num_scalar_prefetch=0,
            grid=(npad // tm, npad // tk),
            in_specs=[
                pl.BlockSpec((tm, tk), lambda i, k: (i, k)),      # A_hat tile
                pl.BlockSpec((npad, cpad), lambda i, k: (0, 0)),  # P resident
                pl.BlockSpec((1, cpad), lambda i, k: (0, 0)),     # bias
            ],
            out_specs=pl.BlockSpec((tm, cpad), lambda i, k: (i, 0)),
            scratch_shapes=[pltpu.VMEM((tm, cpad), jnp.float32)],
        ),
        compiler_params=pltpu.CompilerParams(
            dimension_semantics=("parallel", "arbitrary"),
            vmem_limit_bytes=vmem_limit,
        ),
        cost_estimate=pl.CostEstimate(
            flops=flops, transcendentals=0, bytes_accessed=bytes_accessed
        ),
    )(adj_p, p_p, b_p)


# ---------------------------------------------------------------------------
# Graph glue (plain JAX) + forward
# ---------------------------------------------------------------------------

def _normalized_adjacency_padded(edge_index, n, npad, dtype):
    """Dense GCN normalization D^{-1/2}(A+I)D^{-1/2}, built directly at padded
    shape and cast once. Duplicate edges are summed; self-loops follow
    add_remaining_self_loops semantics (existing self-loop weights kept)."""
    src = edge_index[0]
    dst = edge_index[1]
    adj = jnp.zeros((npad, npad), jnp.float32)
    adj = adj.at[dst, src].add(1.0)
    idx = jnp.arange(n)
    diag = adj[idx, idx]
    adj = adj.at[idx, idx].set(jnp.where(diag > 0.0, diag, 1.0))
    deg = jnp.sum(adj, axis=1)          # padded rows/cols are zero -> deg 0 -> dinv 0
    dinv = jnp.where(deg > 0, jax.lax.rsqrt(deg), 0.0)
    return (adj * dinv[:, None] * dinv[None, :]).astype(dtype)


def encoder_forward(x, edge_index, params, *, force_tiled=False, tile_override=None):
    """Equivalent of Encoder.forward(x, edge_index) -> (mu, logstd)."""
    n, in_c = x.shape
    w1, b1, wmu, bmu, wls, bls = params
    hidden = w1.shape[1]
    out_c = wmu.shape[1]

    # Fuse mu / logstd branches into one wide layer.
    w2 = jnp.concatenate([wmu, wls], axis=1)   # [hidden, 2*out_c]
    b2 = jnp.concatenate([bmu, bls], axis=1)   # [1, 2*out_c]

    # Lane/sublane-friendly padding; npad decoupled from the tile size.
    npad = _round_up(n, 256)
    fpad = _round_up(in_c, 128)
    hpad = _round_up(hidden, 128)
    opad = _round_up(2 * out_c, 128)

    vmem_limit = _vmem_limit_bytes()

    adj_p = _normalized_adjacency_padded(edge_index, n, npad, jnp.bfloat16)
    x_p = _pad2(x, npad, fpad).astype(jnp.bfloat16)
    w1_p = _pad2(w1, fpad, hpad).astype(jnp.bfloat16)
    b1_p = _pad2(b1, 1, hpad).astype(jnp.float32)
    w2_p = _pad2(w2, hpad, opad).astype(jnp.bfloat16)
    b2_p = _pad2(b2, 1, opad).astype(jnp.float32)

    if npad <= _SMALL_NPAD and not force_tiled:
        # Small graphs: one fused kernel, no intermediate HBM round-trips.
        out = _fused_small(adj_p, x_p, w1_p, b1_p, w2_p, b2_p, vmem_limit)
    else:
        tile = tile_override if tile_override is not None else _pick_tile(
            npad, vmem_limit, max(hpad, opad))
        assert npad % tile == 0, (npad, tile)
        # conv1 feature transform: P1 = X @ W1
        p1 = _feature_transform(x_p, w1_p, tile, vmem_limit)
        # A_hat @ P1 + b1, relu, fused H @ [Wmu|Wls] epilogue (H never hits HBM)
        p2 = _propagate_fused(adj_p, p1, b1_p, w2_p, tile, tile, vmem_limit)
        # A_hat @ P2 + [bmu|bls]
        out = _propagate(adj_p, p2, b2_p, tile, tile, vmem_limit)

    mu = out[:n, :out_c]
    logstd = out[:n, out_c:2 * out_c]
    return mu, logstd


# ---------------------------------------------------------------------------
# Params / reference / test
# ---------------------------------------------------------------------------

def init_params(key, in_channels, hidden_channels, out_channels):
    k1, k2, k3 = jax.random.split(key, 3)

    def glorot(k, fan_in, fan_out):
        lim = (6.0 / (fan_in + fan_out)) ** 0.5
        return jax.random.uniform(k, (fan_in, fan_out), jnp.float32, -lim, lim)

    w1 = glorot(k1, in_channels, hidden_channels)
    b1 = jnp.zeros((1, hidden_channels), jnp.float32)
    wmu = glorot(k2, hidden_channels, out_channels)
    bmu = jnp.zeros((1, out_channels), jnp.float32)
    wls = glorot(k3, hidden_channels, out_channels)
    bls = jnp.zeros((1, out_channels), jnp.float32)
    return (w1, b1, wmu, bmu, wls, bls)


def _reference_forward(x, edge_index, params):
    n = x.shape[0]
    adj = _normalized_adjacency_padded(edge_index, n, n, jnp.float32)
    w1, b1, wmu, bmu, wls, bls = params
    h = jnp.maximum(adj @ (x @ w1) + b1, 0.0)
    return adj @ (h @ wmu) + bmu, adj @ (h @ wls) + bls


if __name__ == "__main__":
    IN_C, HID_C, OUT_C = 8, 32, 16
    key = jax.random.PRNGKey(0)
    kx1, ke1, kp, kx2, ke2 = jax.random.split(key, 5)
    params = init_params(kp, IN_C, HID_C, OUT_C)

    # --- Small-N path: single fused kernel -------------------------------
    N1, E1 = 16, 40
    x1 = jax.random.normal(kx1, (N1, IN_C), jnp.float32)
    e1 = jax.random.randint(ke1, (2, E1), 0, N1, dtype=jnp.int32)
    mu1, ls1 = jax.jit(encoder_forward)(x1, e1, params)
    jax.block_until_ready((mu1, ls1))
    mu1_ref, ls1_ref = _reference_forward(x1, e1, params)
    assert mu1.shape == (N1, OUT_C) and ls1.shape == (N1, OUT_C)
    # bf16 MXU operands (f32 accumulation) -> relaxed tolerance vs f32 reference.
    assert jnp.allclose(mu1, mu1_ref, atol=5e-2, rtol=5e-2)
    assert jnp.allclose(ls1, ls1_ref, atol=5e-2, rtol=5e-2)

    # --- Tiled path (forced, small tile so accumulator / resident-P logic runs)
    N2, E2 = 300, 900
    x2 = jax.random.normal(kx2, (N2, IN_C), jnp.float32)
    e2 = jax.random.randint(ke2, (2, E2), 0, N2, dtype=jnp.int32)
    tiled_fwd = jax.jit(
        functools.partial(encoder_forward, force_tiled=True, tile_override=128))
    mu2, ls2 = tiled_fwd(x2, e2, params)
    jax.block_until_ready((mu2, ls2))
    mu2_ref, ls2_ref = _reference_forward(x2, e2, params)
    assert mu2.shape == (N2, OUT_C) and ls2.shape == (N2, OUT_C)
    assert jnp.allclose(mu2, mu2_ref, atol=5e-2, rtol=5e-2)
    assert jnp.allclose(ls2, ls2_ref, atol=5e-2, rtol=5e-2)

    print("KERNEL_OK")
</pallas_src>

<mosaic_0001>
module attributes {stable_mosaic.version = 11 : i64} {
  func.func @_fused_encoder_kernel(%arg0: i32, %arg1: memref<256x256xbf16, #tpu.memory_space<vmem>>, %arg2: memref<256x128xbf16, #tpu.memory_space<vmem>>, %arg3: memref<128x128xbf16, #tpu.memory_space<vmem>>, %arg4: memref<1x128xf32, #tpu.memory_space<vmem>>, %arg5: memref<128x128xbf16, #tpu.memory_space<vmem>>, %arg6: memref<1x128xf32, #tpu.memory_space<vmem>>, %arg7: memref<256x128xf32, #tpu.memory_space<vmem>>) attributes {dimension_semantics = [#tpu.dimension_semantics<arbitrary>], iteration_bounds = array<i64: 1>, scalar_prefetch = 0 : i64, scratch_operands = 0 : i64, tpu.core_type = #tpu.core_type<tc>, window_params = [{pipeline_mode = #tpu.pipeline_mode<synchronous>, transform_indices = @transform_0, window_bounds = array<i64: 256, 256>}, {pipeline_mode = #tpu.pipeline_mode<synchronous>, transform_indices = @transform_1, window_bounds = array<i64: 256, 128>}, {pipeline_mode = #tpu.pipeline_mode<synchronous>, transform_indices = @transform_2, window_bounds = array<i64: 128, 128>}, {pipeline_mode = #tpu.pipeline_mode<synchronous>, transform_indices = @transform_3, window_bounds = array<i64: 1, 128>}, {pipeline_mode = #tpu.pipeline_mode<synchronous>, transform_indices = @transform_4, window_bounds = array<i64: 128, 128>}, {pipeline_mode = #tpu.pipeline_mode<synchronous>, transform_indices = @transform_5, window_bounds = array<i64: 1, 128>}, {pipeline_mode = #tpu.pipeline_mode<synchronous>, transform_indices = @transform_6, window_bounds = array<i64: 256, 128>}]} {
    %c0 = arith.constant 0 : index
    %c0_0 = arith.constant 0 : index
    %0 = vector.load %arg2[%c0, %c0_0] : memref<256x128xbf16, #tpu.memory_space<vmem>>, vector<256x128xbf16>
    %c0_1 = arith.constant 0 : index
    %c0_2 = arith.constant 0 : index
    %1 = vector.load %arg3[%c0_1, %c0_2] : memref<128x128xbf16, #tpu.memory_space<vmem>>, vector<128x128xbf16>
    %cst = arith.constant dense<0.000000e+00> : vector<256x128xf32>
    %2 = tpu.matmul %0, %1, %cst {dimension_numbers = #tpu.dot_dimension_numbers<[1], [0], [0], [1], [0, 0, 1, 1], [], []>} : vector<256x128xbf16>, vector<128x128xbf16>, vector<256x128xf32> -> vector<256x128xf32>
    %3 = arith.truncf %2 : vector<256x128xf32> to vector<256x128xbf16>
    %c0_3 = arith.constant 0 : index
    %c0_4 = arith.constant 0 : index
    %4 = vector.load %arg1[%c0_3, %c0_4] : memref<256x256xbf16, #tpu.memory_space<vmem>>, vector<256x256xbf16>
    %cst_5 = arith.constant dense<0.000000e+00> : vector<256x128xf32>
    %5 = tpu.matmul %4, %3, %cst_5 {dimension_numbers = #tpu.dot_dimension_numbers<[1], [0], [0], [1], [0, 0, 1, 1], [], []>} : vector<256x256xbf16>, vector<256x128xbf16>, vector<256x128xf32> -> vector<256x128xf32>
    %c0_6 = arith.constant 0 : index
    %c0_7 = arith.constant 0 : index
    %6 = vector.load %arg4[%c0_6, %c0_7] : memref<1x128xf32, #tpu.memory_space<vmem>>, vector<1x128xf32>
    %7 = vector.broadcast %6 : vector<1x128xf32> to vector<256x128xf32>
    %8 = arith.addf %5, %7 : vector<256x128xf32>
    %cst_8 = arith.constant 0.000000e+00 : f32
    %9 = vector.broadcast %cst_8 : f32 to vector<256x128xf32>
    %10 = arith.maximumf %8, %9 : vector<256x128xf32>
    %11 = arith.truncf %10 : vector<256x128xf32> to vector<256x128xbf16>
    %c0_9 = arith.constant 0 : index
    %c0_10 = arith.constant 0 : index
    %12 = vector.load %arg5[%c0_9, %c0_10] : memref<128x128xbf16, #tpu.memory_space<vmem>>, vector<128x128xbf16>
    %cst_11 = arith.constant dense<0.000000e+00> : vector<256x128xf32>
    %13 = tpu.matmul %11, %12, %cst_11 {dimension_numbers = #tpu.dot_dimension_numbers<[1], [0], [0], [1], [0, 0, 1, 1], [], []>} : vector<256x128xbf16>, vector<128x128xbf16>, vector<256x128xf32> -> vector<256x128xf32>
    %14 = arith.truncf %13 : vector<256x128xf32> to vector<256x128xbf16>
    %c0_12 = arith.constant 0 : index
    %c0_13 = arith.constant 0 : index
    %15 = vector.load %arg1[%c0_12, %c0_13] : memref<256x256xbf16, #tpu.memory_space<vmem>>, vector<256x256xbf16>
    %cst_14 = arith.constant dense<0.000000e+00> : vector<256x128xf32>
    %16 = tpu.matmul %15, %14, %cst_14 {dimension_numbers = #tpu.dot_dimension_numbers<[1], [0], [0], [1], [0, 0, 1, 1], [], []>} : vector<256x256xbf16>, vector<256x128xbf16>, vector<256x128xf32> -> vector<256x128xf32>
    %c0_15 = arith.constant 0 : index
    %c0_16 = arith.constant 0 : index
    %17 = vector.load %arg6[%c0_15, %c0_16] : memref<1x128xf32, #tpu.memory_space<vmem>>, vector<1x128xf32>
    %18 = vector.broadcast %17 : vector<1x128xf32> to vector<256x128xf32>
    %19 = arith.addf %16, %18 : vector<256x128xf32>
    %c0_17 = arith.constant 0 : index
    %c0_18 = arith.constant 0 : index
    %20 = vector.load %arg7[%c0_17, %c0_18] : memref<256x128xf32, #tpu.memory_space<vmem>>, vector<256x128xf32>
    tpu.vector_store %arg7[%c0_17, %c0_18], %19 {strides = array<i32>} : memref<256x128xf32, #tpu.memory_space<vmem>>, vector<256x128xf32>,
    return
  }
  func.func @transform_0(%arg0: i32) -> (i32, i32) {
    %c0_i32 = arith.constant 0 : i32
    %c0_i32_0 = arith.constant 0 : i32
    %c0_i32_1 = arith.constant 0 : i32
    return %c0_i32, %c0_i32_0 : i32, i32
  }
  func.func @transform_1(%arg0: i32) -> (i32, i32) {
    %c0_i32 = arith.constant 0 : i32
    %c0_i32_0 = arith.constant 0 : i32
    %c0_i32_1 = arith.constant 0 : i32
    return %c0_i32, %c0_i32_0 : i32, i32
  }
  func.func @transform_2(%arg0: i32) -> (i32, i32) {
    %c0_i32 = arith.constant 0 : i32
    %c0_i32_0 = arith.constant 0 : i32
    %c0_i32_1 = arith.constant 0 : i32
    return %c0_i32, %c0_i32_0 : i32, i32
  }
  func.func @transform_3(%arg0: i32) -> (i32, i32) {
    %c0_i32 = arith.constant 0 : i32
    %c0_i32_0 = arith.constant 0 : i32
    %c0_i32_1 = arith.constant 0 : i32
    return %c0_i32, %c0_i32_0 : i32, i32
  }
  func.func @transform_4(%arg0: i32) -> (i32, i32) {
    %c0_i32 = arith.constant 0 : i32
    %c0_i32_0 = arith.constant 0 : i32
    %c0_i32_1 = arith.constant 0 : i32
    return %c0_i32, %c0_i32_0 : i32, i32
  }
  func.func @transform_5(%arg0: i32) -> (i32, i32) {
    %c0_i32 = arith.constant 0 : i32
    %c0_i32_0 = arith.constant 0 : i32
    %c0_i32_1 = arith.constant 0 : i32
    return %c0_i32, %c0_i32_0 : i32, i32
  }
  func.func @transform_6(%arg0: i32) -> (i32, i32) {
    %c0_i32 = arith.constant 0 : i32
    %c0_i32_0 = arith.constant 0 : i32
    %c0_i32_1 = arith.constant 0 : i32
    return %c0_i32, %c0_i32_0 : i32, i32
  }
}

</mosaic_0001>

<llo_original>
// kernel: encoder_forward.1
$region0: #{encoder_forward.1}
  #allocation0 [shape = 'u32[]', space=smem, size = 0x4, offset = 0x4, fixed_abs, tag = 'smem constant byte address 0x4 - core index']
  #allocation1 [shape = 'u32[144,128]{1,0:T(1,128)}', space=vmem, size = 0x12000, scoped, tag = 'internal scratch']
  %s0 = inlined_call_operand.vmem [shape: bf16[256,256], index: 0, kind: input, shape index: {}]
  %s1 = inlined_call_operand.vmem [shape: bf16[256,128], index: 1, kind: input, shape index: {}]
  %s2 = inlined_call_operand.vmem [shape: bf16[128,128], index: 2, kind: input, shape index: {}]
  %s3 = inlined_call_operand.vmem [shape: f32[1,128], index: 3, kind: input, shape index: {}]
  %s4 = inlined_call_operand.vmem [shape: bf16[128,128], index: 4, kind: input, shape index: {}]
  %s5 = inlined_call_operand.vmem [shape: f32[1,128], index: 5, kind: input, shape index: {}]
  %s6 = inlined_call_operand.vmem [shape: f32[256,128], index: 6, kind: output, shape index: {}]
  %s7 = sld [smem:[#allocation0]]
  $region34: #{encoder_forward.1} parent=0
    _
  %s9 = ssub.s32 1, %s7
  %s10 = scalar_select 0, %s9, %s7
  // Predicated region
  $region2: #{encoder_forward.1} parent=0 // pred_check
    _
  $region3: #{encoder_forward.1} parent=0 // pred_check_branch
    %12 = sbr.rel (0) target = $region5
  $region4: #{encoder_forward.1} parent=0 // pred_region
    _
  $region5: #{encoder_forward.1} parent=0 // pred_fallthru
    _
  // Predicated region
  $region6: #{encoder_forward.1} parent=0 // pred_check
    _
  $region7: #{encoder_forward.1} parent=0 // pred_check_branch
    %14 = sbr.rel (0) target = $region9
  $region8: #{encoder_forward.1} parent=0 // pred_region
    _
  $region9: #{encoder_forward.1} parent=0 // pred_fallthru
    _
  // Predicated region
  $region10: #{encoder_forward.1} parent=0 // pred_check
    _
  $region11: #{encoder_forward.1} parent=0 // pred_check_branch
    %16 = sbr.rel (0) target = $region13
  $region12: #{encoder_forward.1} parent=0 // pred_region
    _
  $region13: #{encoder_forward.1} parent=0 // pred_fallthru
    _
  // Predicated region
  $region14: #{encoder_forward.1} parent=0 // pred_check
    _
  $region15: #{encoder_forward.1} parent=0 // pred_check_branch
    %18 = sbr.rel (0) target = $region17
  $region16: #{encoder_forward.1} parent=0 // pred_region
    _
  $region17: #{encoder_forward.1} parent=0 // pred_fallthru
    _
  // Predicated region
  $region18: #{encoder_forward.1} parent=0 // pred_check
    _
  $region19: #{encoder_forward.1} parent=0 // pred_check_branch
    %20 = sbr.rel (0) target = $region21
  $region20: #{encoder_forward.1} parent=0 // pred_region
    _
  $region21: #{encoder_forward.1} parent=0 // pred_fallthru
    _
  // Predicated region
  $region22: #{encoder_forward.1} parent=0 // pred_check
    _
  $region23: #{encoder_forward.1} parent=0 // pred_check_branch
    %22 = sbr.rel (0) target = $region25
  $region24: #{encoder_forward.1} parent=0 // pred_region
    _
  $region25: #{encoder_forward.1} parent=0 // pred_fallthru
    _
  %v24 = vld [vmem:[%s1] sm:$0xf]
  %v25 = vld [vmem:[%s1 + $0x4] sm:$0xf]
  %v26 = vld [vmem:[%s1 + $0x8] sm:$0xf]
  %v27 = vld [vmem:[%s1 + $0xc] sm:$0xf]
  %v28 = vld [vmem:[%s1 + $0x10] sm:$0xf]
  %v29 = vld [vmem:[%s1 + $0x14] sm:$0xf]
  %v30 = vld [vmem:[%s1 + $0x18] sm:$0xf]
  %v31 = vld [vmem:[%s1 + $0x1c] sm:$0xf]
  %v32 = vld [vmem:[%s1 + $0x20] sm:$0xf]
  %v33 = vld [vmem:[%s1 + $0x24] sm:$0xf]
  %v34 = vld [vmem:[%s1 + $0x28] sm:$0xf]
  %v35 = vld [vmem:[%s1 + $0x2c] sm:$0xf]
  %v36 = vld [vmem:[%s1 + $0x30] sm:$0xf]
  %v37 = vld [vmem:[%s1 + $0x34] sm:$0xf]
  %v38 = vld [vmem:[%s1 + $0x38] sm:$0xf]
  %v39 = vld [vmem:[%s1 + $0x3c] sm:$0xf]
  %v40 = vld [vmem:[%s1 + $0x40] sm:$0xf]
  %v41 = vld [vmem:[%s1 + $0x44] sm:$0xf]
  %v42 = vld [vmem:[%s1 + $0x48] sm:$0xf]
  %v43 = vld [vmem:[%s1 + $0x4c] sm:$0xf]
  %v44 = vld [vmem:[%s1 + $0x50] sm:$0xf]
  %v45 = vld [vmem:[%s1 + $0x54] sm:$0xf]
  %v46 = vld [vmem:[%s1 + $0x58] sm:$0xf]
  %v47 = vld [vmem:[%s1 + $0x5c] sm:$0xf]
  %v48 = vld [vmem:[%s1 + $0x60] sm:$0xf]
  %v49 = vld [vmem:[%s1 + $0x64] sm:$0xf]
  %v50 = vld [vmem:[%s1 + $0x68] sm:$0xf]
  %v51 = vld [vmem:[%s1 + $0x6c] sm:$0xf]
  %v52 = vld [vmem:[%s1 + $0x70] sm:$0xf]
  %v53 = vld [vmem:[%s1 + $0x74] sm:$0xf]
  %v54 = vld [vmem:[%s1 + $0x78] sm:$0xf]
  %v55 = vld [vmem:[%s1 + $0x7c] sm:$0xf]
  %v56 = vld [vmem:[%s2] sm:$0xf]
  %v57 = vld [vmem:[%s2 + $0x4] sm:$0xf]
  %v58 = vld [vmem:[%s2 + $0x8] sm:$0xf]
  %v59 = vld [vmem:[%s2 + $0xc] sm:$0xf]
  %v60 = vld [vmem:[%s2 + $0x10] sm:$0xf]
  %v61 = vld [vmem:[%s2 + $0x14] sm:$0xf]
  %v62 = vld [vmem:[%s2 + $0x18] sm:$0xf]
  %v63 = vld [vmem:[%s2 + $0x1c] sm:$0xf]
  %v64 = vld [vmem:[%s2 + $0x20] sm:$0xf]
  %v65 = vld [vmem:[%s2 + $0x24] sm:$0xf]
  %v66 = vld [vmem:[%s2 + $0x28] sm:$0xf]
  %v67 = vld [vmem:[%s2 + $0x2c] sm:$0xf]
  %v68 = vld [vmem:[%s2 + $0x30] sm:$0xf]
  %v69 = vld [vmem:[%s2 + $0x34] sm:$0xf]
  %v70 = vld [vmem:[%s2 + $0x38] sm:$0xf]
  %v71 = vld [vmem:[%s2 + $0x3c] sm:$0xf]
  %v104 = vunpack.c.l.b16 %v24
  %v105 = vunpack.c.l.b16 %v25
  %v106 = vunpack.c.l.b16 %v26
  %v107 = vunpack.c.l.b16 %v27
  %v108 = vunpack.c.l.b16 %v28
  %v109 = vunpack.c.l.b16 %v29
  %v110 = vunpack.c.l.b16 %v30
  %v111 = vunpack.c.l.b16 %v31
  %v112 = vunpack.c.l.b16 %v32
  %v113 = vunpack.c.l.b16 %v33
  %v114 = vunpack.c.l.b16 %v34
  %v115 = vunpack.c.l.b16 %v35
  %v116 = vunpack.c.l.b16 %v36
  %v117 = vunpack.c.l.b16 %v37
  %v118 = vunpack.c.l.b16 %v38
  %v119 = vunpack.c.l.b16 %v39
  %v120 = vunpack.c.l.b16 %v40
  %v121 = vunpack.c.l.b16 %v41
  %v122 = vunpack.c.l.b16 %v42
  %v123 = vunpack.c.l.b16 %v43
  %v124 = vunpack.c.l.b16 %v44
  %v125 = vunpack.c.l.b16 %v45
  %v126 = vunpack.c.l.b16 %v46
  %v127 = vunpack.c.l.b16 %v47
  %v128 = vunpack.c.l.b16 %v48
  %v129 = vunpack.c.l.b16 %v49
  %v130 = vunpack.c.l.b16 %v50
  %v131 = vunpack.c.l.b16 %v51
  %v132 = vunpack.c.l.b16 %v52
  %v133 = vunpack.c.l.b16 %v53
  %v134 = vunpack.c.l.b16 %v54
  %v135 = vunpack.c.l.b16 %v55
  %v136 = vpack.c.b16 %v105, %v104
  %v137 = vpack.c.b16 %v107, %v106
  %v138 = vpack.c.b16 %v109, %v108
  %v139 = vpack.c.b16 %v111, %v110
  %v140 = vpack.c.b16 %v113, %v112
  %v141 = vpack.c.b16 %v115, %v114
  %v142 = vpack.c.b16 %v117, %v116
  %v143 = vpack.c.b16 %v119, %v118
  %v144 = vpack.c.b16 %v121, %v120
  %v145 = vpack.c.b16 %v123, %v122
  %v146 = vpack.c.b16 %v125, %v124
  %v147 = vpack.c.b16 %v127, %v126
  %v148 = vpack.c.b16 %v129, %v128
  %v149 = vpack.c.b16 %v131, %v130
  %v150 = vpack.c.b16 %v133, %v132
  %v151 = vpack.c.b16 %v135, %v134
  %v184 = vunpack.c.l.b16 %v56
  %v185 = vunpack.c.l.b16 %v57
  %v186 = vunpack.c.l.b16 %v58
  %v187 = vunpack.c.l.b16 %v59
  %v188 = vunpack.c.l.b16 %v60
  %v189 = vunpack.c.l.b16 %v61
  %v190 = vunpack.c.l.b16 %v62
  %v191 = vunpack.c.l.b16 %v63
  %v192 = vunpack.c.l.b16 %v64
  %v193 = vunpack.c.l.b16 %v65
  %v194 = vunpack.c.l.b16 %v66
  %v195 = vunpack.c.l.b16 %v67
  %v196 = vunpack.c.l.b16 %v68
  %v197 = vunpack.c.l.b16 %v69
  %v198 = vunpack.c.l.b16 %v70
  %v199 = vunpack.c.l.b16 %v71
  %v200 = vpack.c.b16 %v185, %v184
  %v201 = vpack.c.b16 %v187, %v186
  %v202 = vpack.c.b16 %v189, %v188
  %v203 = vpack.c.b16 %v191, %v190
  %v204 = vpack.c.b16 %v193, %v192
  %v205 = vpack.c.b16 %v195, %v194
  %v206 = vpack.c.b16 %v197, %v196
  %v207 = vpack.c.b16 %v199, %v198
  %216 = vmatprep.subr.bf16.mxu0 0
  %217 = vmatpush1.bf16.msra.mxu0 %v200
  %218 = vmatprep.subr.bf16.mxu0 0
  %219 = vmatpush1.bf16.msra.mxu0 %v201
  %220 = vmatprep.subr.bf16.mxu0 0
  %221 = vmatpush1.bf16.msra.mxu0 %v202
  %222 = vmatprep.subr.bf16.mxu0 0
  %223 = vmatpush1.bf16.msra.mxu0 %v203
  %224 = vmatprep.subr.bf16.mxu0 0
  %225 = vmatpush1.bf16.msra.mxu0 %v204
  %226 = vmatprep.subr.bf16.mxu0 0
  %227 = vmatpush1.bf16.msra.mxu0 %v205
  %228 = vmatprep.subr.bf16.mxu0 0
  %229 = vmatpush1.bf16.msra.mxu0 %v206
  %230 = vmatprep.subr.bf16.mxu0 0
  %231 = vmatpush1.bf16.msra.mxu0 %v207
  %232 = vmatprep.subr.bf16.mxu0 0
  %233 = vmatpush1.bf16.msra.mxu0 0
  %234 = vmatprep.subr.bf16.mxu0 0
  %235 = vmatpush1.bf16.msra.mxu0 0
  %236 = vmatprep.subr.bf16.mxu0 0
  %237 = vmatpush1.bf16.msra.mxu0 0
  %238 = vmatprep.subr.bf16.mxu0 0
  %239 = vmatpush1.bf16.msra.mxu0 0
  %240 = vmatprep.subr.bf16.mxu0 0
  %241 = vmatpush1.bf16.msra.mxu0 0
  %242 = vmatprep.subr.bf16.mxu0 0
  %243 = vmatpush1.bf16.msra.mxu0 0
  %244 = vmatprep.subr.bf16.mxu0 0
  %245 = vmatpush1.bf16.msra.mxu0 0
  %246 = vmatprep.subr.bf16.mxu0 0
  %247 = vmatpush1.bf16.msra.mxu0 0
  %248 = vmatprep.mubr.bf16.mxu0 0
  %249 = vmatmul.mubr.bf16.gmra.mrb[0].mxu0 %v136
  %v250 = vpop.f32.mrb[0].mxu0
  %v251 = vadd.f32 0.0, %v250
  %v252 = vpop.f32.mrb[0].mxu0
  %v253 = vpop.f32.mrb[0].mxu0
  %v254 = vadd.f32 0.0, %v253
  %v255 = vpop.f32.mrb[0].mxu0
  %256 = vmatprep.mubr.bf16.mxu0 0
  %257 = vmatmul.mubr.bf16.gmra.mrb[0].mxu0 %v137
  %v258 = vpop.f32.mrb[0].mxu0
  %v259 = vadd.f32 0.0, %v258
  %v260 = vpop.f32.mrb[0].mxu0
  %v261 = vpop.f32.mrb[0].mxu0
  %v262 = vadd.f32 0.0, %v261
  %v263 = vpop.f32.mrb[0].mxu0
  %264 = vmatprep.mubr.bf16.mxu0 0
  %265 = vmatmul.mubr.bf16.gmra.mrb[0].mxu0 %v138
  %v266 = vpop.f32.mrb[0].mxu0
  %v267 = vadd.f32 0.0, %v266
  %v268 = vpop.f32.mrb[0].mxu0
  %v269 = vpop.f32.mrb[0].mxu0
  %v270 = vadd.f32 0.0, %v269
  %v271 = vpop.f32.mrb[0].mxu0
  %272 = vmatprep.mubr.bf16.mxu0 0
  %273 = vmatmul.mubr.bf16.gmra.mrb[0].mxu0 %v139
  %v274 = vpop.f32.mrb[0].mxu0
  %v275 = vadd.f32 0.0, %v274
  %v276 = vpop.f32.mrb[0].mxu0
  %v277 = vpop.f32.mrb[0].mxu0
  %v278 = vadd.f32 0.0, %v277
  %v279 = vpop.f32.mrb[0].mxu0
  %280 = vmatprep.mubr.bf16.mxu0 0
  %281 = vmatmul.mubr.bf16.gmra.mrb[0].mxu0 %v140
  %v282 = vpop.f32.mrb[0].mxu0
  %v283 = vadd.f32 0.0, %v282
  %v284 = vpop.f32.mrb[0].mxu0
  %v285 = vpop.f32.mrb[0].mxu0
  %v286 = vadd.f32 0.0, %v285
  %v287 = vpop.f32.mrb[0].mxu0
  %288 = vmatprep.mubr.bf16.mxu0 0
  %289 = vmatmul.mubr.bf16.gmra.mrb[0].mxu0 %v141
  %v290 = vpop.f32.mrb[0].mxu0
  %v291 = vadd.f32 0.0, %v290
  %v292 = vpop.f32.mrb[0].mxu0
  %v293 = vpop.f32.mrb[0].mxu0
  %v294 = vadd.f32 0.0, %v293
  %v295 = vpop.f32.mrb[0].mxu0
  %296 = vmatprep.mubr.bf16.mxu0 0
  %297 = vmatmul.mubr.bf16.gmra.mrb[0].mxu0 %v142
  %v298 = vpop.f32.mrb[0].mxu0
  %v299 = vadd.f32 0.0, %v298
  %v300 = vpop.f32.mrb[0].mxu0
  %v301 = vpop.f32.mrb[0].mxu0
  %v302 = vadd.f32 0.0, %v301
  %v303 = vpop.f32.mrb[0].mxu0
  %304 = vmatprep.mubr.bf16.mxu0 0
  %305 = vmatmul.mubr.bf16.gmra.mrb[0].mxu0 %v143
  %v306 = vpop.f32.mrb[0].mxu0
  %v307 = vadd.f32 0.0, %v306
  %v308 = vpop.f32.mrb[0].mxu0
  %v309 = vpop.f32.mrb[0].mxu0
  %v310 = vadd.f32 0.0, %v309
  %v311 = vpop.f32.mrb[0].mxu0
  %312 = vmatprep.mubr.bf16.mxu0 0
  %313 = vmatmul.mubr.bf16.gmra.mrb[0].mxu0 %v144
  %v314 = vpop.f32.mrb[0].mxu0
  %v315 = vadd.f32 0.0, %v314
  %v316 = vpop.f32.mrb[0].mxu0
  %v317 = vpop.f32.mrb[0].mxu0
  %v318 = vadd.f32 0.0, %v317
  %v319 = vpop.f32.mrb[0].mxu0
  %320 = vmatprep.mubr.bf16.mxu0 0
  %321 = vmatmul.mubr.bf16.gmra.mrb[0].mxu0 %v145
  %v322 = vpop.f32.mrb[0].mxu0
  %v323 = vadd.f32 0.0, %v322
  %v324 = vpop.f32.mrb[0].mxu0
  %v325 = vpop.f32.mrb[0].mxu0
  %v326 = vadd.f32 0.0, %v325
  %v327 = vpop.f32.mrb[0].mxu0
  %328 = vmatprep.mubr.bf16.mxu0 0
  %329 = vmatmul.mubr.bf16.gmra.mrb[0].mxu0 %v146
  %v330 = vpop.f32.mrb[0].mxu0
  %v331 = vadd.f32 0.0, %v330
  %v332 = vpop.f32.mrb[0].mxu0
  %v333 = vpop.f32.mrb[0].mxu0
  %v334 = vadd.f32 0.0, %v333
  %v335 = vpop.f32.mrb[0].mxu0
  %336 = vmatprep.mubr.bf16.mxu0 0
  %337 = vmatmul.mubr.bf16.gmra.mrb[0].mxu0 %v147
  %v338 = vpop.f32.mrb[0].mxu0
  %v339 = vadd.f32 0.0, %v338
  %v340 = vpop.f32.mrb[0].mxu0
  %v341 = vpop.f32.mrb[0].mxu0
  %v342 = vadd.f32 0.0, %v341
  %v343 = vpop.f32.mrb[0].mxu0
  %344 = vmatprep.mubr.bf16.mxu0 0
  %345 = vmatmul.mubr.bf16.gmra.mrb[0].mxu0 %v148
  %v346 = vpop.f32.mrb[0].mxu0
  %v347 = vadd.f32 0.0, %v346
  %v348 = vpop.f32.mrb[0].mxu0
  %v349 = vpop.f32.mrb[0].mxu0
  %v350 = vadd.f32 0.0, %v349
  %v351 = vpop.f32.mrb[0].mxu0
  %352 = vmatprep.mubr.bf16.mxu0 0
  %353 = vmatmul.mubr.bf16.gmra.mrb[0].mxu0 %v149
  %v354 = vpop.f32.mrb[0].mxu0
  %v355 = vadd.f32 0.0, %v354
  %v356 = vpop.f32.mrb[0].mxu0
  %v357 = vpop.f32.mrb[0].mxu0
  %v358 = vadd.f32 0.0, %v357
  %v359 = vpop.f32.mrb[0].mxu0
  %360 = vmatprep.mubr.bf16.mxu0 0
  %361 = vmatmul.mubr.bf16.gmra.mrb[0].mxu0 %v150
  %v362 = vpop.f32.mrb[0].mxu0
  %v363 = vadd.f32 0.0, %v362
  %v364 = vpop.f32.mrb[0].mxu0
  %v365 = vpop.f32.mrb[0].mxu0
  %v366 = vadd.f32 0.0, %v365
  %v367 = vpop.f32.mrb[0].mxu0
  %368 = vmatprep.mubr.bf16.mxu0 0
  %369 = vmatmul.mubr.bf16.gmra.mrb[0].mxu0 %v151
  %v370 = vpop.f32.mrb[0].mxu0
  %v371 = vadd.f32 0.0, %v370
  %v372 = vpop.f32.mrb[0].mxu0
  %v373 = vpop.f32.mrb[0].mxu0
  %v374 = vadd.f32 0.0, %v373
  %v375 = vpop.f32.mrb[0].mxu0
  %376 = vdwg.mxu0
  %v377 = vpack.c.bf16 %v254, %v251
  %v378 = vpack.c.bf16 %v262, %v259
  %v379 = vpack.c.bf16 %v270, %v267
  %v380 = vpack.c.bf16 %v278, %v275
  %v381 = vpack.c.bf16 %v286, %v283
  %v382 = vpack.c.bf16 %v294, %v291
  %v383 = vpack.c.bf16 %v302, %v299
  %v384 = vpack.c.bf16 %v310, %v307
  %v385 = vpack.c.bf16 %v318, %v315
  %v386 = vpack.c.bf16 %v326, %v323
  %v387 = vpack.c.bf16 %v334, %v331
  %v388 = vpack.c.bf16 %v342, %v339
  %v389 = vpack.c.bf16 %v350, %v347
  %v390 = vpack.c.bf16 %v358, %v355
  %v391 = vpack.c.bf16 %v366, %v363
  %v392 = vpack.c.bf16 %v374, %v371
  %v393 = vld [vmem:[%s0] sm:$0xff]
  %v394 = vld [vmem:[%s0 + $0x8] sm:$0xff]
  %v395 = vld [vmem:[%s0 + $0x10] sm:$0xff]
  %v396 = vld [vmem:[%s0 + $0x18] sm:$0xff]
  %v397 = vld [vmem:[%s0 + $0x20] sm:$0xff]
  %v398 = vld [vmem:[%s0 + $0x28] sm:$0xff]
  %v399 = vld [vmem:[%s0 + $0x30] sm:$0xff]
  %v400 = vld [vmem:[%s0 + $0x38] sm:$0xff]
  %v401 = vld [vmem:[%s0 + $0x40] sm:$0xff]
  %v402 = vld [vmem:[%s0 + $0x48] sm:$0xff]
  %v403 = vld [vmem:[%s0 + $0x50] sm:$0xff]
  %v404 = vld [vmem:[%s0 + $0x58] sm:$0xff]
  %v405 = vld [vmem:[%s0 + $0x60] sm:$0xff]
  %v406 = vld [vmem:[%s0 + $0x68] sm:$0xff]
  %v407 = vld [vmem:[%s0 + $0x70] sm:$0xff]
  %v408 = vld [vmem:[%s0 + $0x78] sm:$0xff]
  %v409 = vld [vmem:[%s0 + $0x80] sm:$0xff]
  %v410 = vld [vmem:[%s0 + $0x88] sm:$0xff]
  %v411 = vld [vmem:[%s0 + $0x90] sm:$0xff]
  %v412 = vld [vmem:[%s0 + $0x98] sm:$0xff]
  %v413 = vld [vmem:[%s0 + $0xa0] sm:$0xff]
  %v414 = vld [vmem:[%s0 + $0xa8] sm:$0xff]
  %v415 = vld [vmem:[%s0 + $0xb0] sm:$0xff]
  %v416 = vld [vmem:[%s0 + $0xb8] sm:$0xff]
  %v417 = vld [vmem:[%s0 + $0xc0] sm:$0xff]
  %v418 = vld [vmem:[%s0 + $0xc8] sm:$0xff]
  %v419 = vld [vmem:[%s0 + $0xd0] sm:$0xff]
  %v420 = vld [vmem:[%s0 + $0xd8] sm:$0xff]
  %v421 = vld [vmem:[%s0 + $0xe0] sm:$0xff]
  %v422 = vld [vmem:[%s0 + $0xe8] sm:$0xff]
  %v423 = vld [vmem:[%s0 + $0xf0] sm:$0xff]
  %v424 = vld [vmem:[%s0 + $0xf8] sm:$0xff]
  %v425 = vld [vmem:[%s3] sm:$0x1]
  %v427 = vlaneseq
  %v428 = vshrl.u32 %v427, 7
  %v429 = vsub.s32 0, %v428
  %v430 = vrot.slane %v425, %v429
  %v464 = vunpack.c.l.b16 %v393
  %v465 = vunpack.c.h.b16 %v393
  %v466 = vunpack.c.l.b16 %v394
  %v467 = vunpack.c.h.b16 %v394
  %v468 = vunpack.c.l.b16 %v395
  %v469 = vunpack.c.h.b16 %v395
  %v470 = vunpack.c.l.b16 %v396
  %v471 = vunpack.c.h.b16 %v396
  %v472 = vunpack.c.l.b16 %v397
  %v473 = vunpack.c.h.b16 %v397
  %v474 = vunpack.c.l.b16 %v398
  %v475 = vunpack.c.h.b16 %v398
  %v476 = vunpack.c.l.b16 %v399
  %v477 = vunpack.c.h.b16 %v399
  %v478 = vunpack.c.l.b16 %v400
  %v479 = vunpack.c.h.b16 %v400
  %v480 = vunpack.c.l.b16 %v401
  %v481 = vunpack.c.h.b16 %v401
  %v482 = vunpack.c.l.b16 %v402
  %v483 = vunpack.c.h.b16 %v402
  %v484 = vunpack.c.l.b16 %v403
  %v485 = vunpack.c.h.b16 %v403
  %v486 = vunpack.c.l.b16 %v404
  %v487 = vunpack.c.h.b16 %v404
  %v488 = vunpack.c.l.b16 %v405
  %v489 = vunpack.c.h.b16 %v405
  %v490 = vunpack.c.l.b16 %v406
  %v491 = vunpack.c.h.b16 %v406
  %v492 = vunpack.c.l.b16 %v407
  %v493 = vunpack.c.h.b16 %v407
  %v494 = vunpack.c.l.b16 %v408
  %v495 = vunpack.c.h.b16 %v408
  %v496 = vunpack.c.l.b16 %v409
  %v497 = vunpack.c.h.b16 %v409
  %v498 = vunpack.c.l.b16 %v410
  %v499 = vunpack.c.h.b16 %v410
  %v500 = vunpack.c.l.b16 %v411
  %v501 = vunpack.c.h.b16 %v411
  %v502 = vunpack.c.l.b16 %v412
  %v503 = vunpack.c.h.b16 %v412
  %v504 = vunpack.c.l.b16 %v413
  %v505 = vunpack.c.h.b16 %v413
  %v506 = vunpack.c.l.b16 %v414
  %v507 = vunpack.c.h.b16 %v414
  %v508 = vunpack.c.l.b16 %v415
  %v509 = vunpack.c.h.b16 %v415
  %v510 = vunpack.c.l.b16 %v416
  %v511 = vunpack.c.h.b16 %v416
  %v512 = vunpack.c.l.b16 %v417
  %v513 = vunpack.c.h.b16 %v417
  %v514 = vunpack.c.l.b16 %v418
  %v515 = vunpack.c.h.b16 %v418
  %v516 = vunpack.c.l.b16 %v419
  %v517 = vunpack.c.h.b16 %v419
  %v518 = vunpack.c.l.b16 %v420
  %v519 = vunpack.c.h.b16 %v420
  %v520 = vunpack.c.l.b16 %v421
  %v521 = vunpack.c.h.b16 %v421
  %v522 = vunpack.c.l.b16 %v422
  %v523 = vunpack.c.h.b16 %v422
  %v524 = vunpack.c.l.b16 %v423
  %v525 = vunpack.c.h.b16 %v423
  %v526 = vunpack.c.l.b16 %v424
  %v527 = vunpack.c.h.b16 %v424
  %v528 = vpack.c.b16 %v466, %v464
  %v529 = vpack.c.b16 %v467, %v465
  %v530 = vpack.c.b16 %v470, %v468
  %v531 = vpack.c.b16 %v471, %v469
  %v532 = vpack.c.b16 %v474, %v472
  %v533 = vpack.c.b16 %v475, %v473
  %v534 = vpack.c.b16 %v478, %v476
  %v535 = vpack.c.b16 %v479, %v477
  %v536 = vpack.c.b16 %v482, %v480
  %v537 = vpack.c.b16 %v483, %v481
  %v538 = vpack.c.b16 %v486, %v484
  %v539 = vpack.c.b16 %v487, %v485
  %v540 = vpack.c.b16 %v490, %v488
  %v541 = vpack.c.b16 %v491, %v489
  %v542 = vpack.c.b16 %v494, %v492
  %v543 = vpack.c.b16 %v495, %v493
  %v544 = vpack.c.b16 %v498, %v496
  %v545 = vpack.c.b16 %v499, %v497
  %v546 = vpack.c.b16 %v502, %v500
  %v547 = vpack.c.b16 %v503, %v501
  %v548 = vpack.c.b16 %v506, %v504
  %v549 = vpack.c.b16 %v507, %v505
  %v550 = vpack.c.b16 %v510, %v508
  %v551 = vpack.c.b16 %v511, %v509
  %v552 = vpack.c.b16 %v514, %v512
  %v553 = vpack.c.b16 %v515, %v513
  %v554 = vpack.c.b16 %v518, %v516
  %v555 = vpack.c.b16 %v519, %v517
  %v556 = vpack.c.b16 %v522, %v520
  %v557 = vpack.c.b16 %v523, %v521
  %v558 = vpack.c.b16 %v526, %v524
  %v559 = vpack.c.b16 %v527, %v525
  %592 = vmatprep.subr.bf16.mxu0 0
  %593 = vmatpush1.bf16.msra.mxu0 %v377
  %594 = vmatprep.subr.bf16.mxu0 0
  %595 = vmatpush1.bf16.msra.mxu0 %v378
  %596 = vmatprep.subr.bf16.mxu0 0
  %597 = vmatpush1.bf16.msra.mxu0 %v379
  %598 = vmatprep.subr.bf16.mxu0 0
  %599 = vmatpush1.bf16.msra.mxu0 %v380
  %600 = vmatprep.subr.bf16.mxu0 0
  %601 = vmatpush1.bf16.msra.mxu0 %v381
  %602 = vmatprep.subr.bf16.mxu0 0
  %603 = vmatpush1.bf16.msra.mxu0 %v382
  %604 = vmatprep.subr.bf16.mxu0 0
  %605 = vmatpush1.bf16.msra.mxu0 %v383
  %606 = vmatprep.subr.bf16.mxu0 0
  %607 = vmatpush1.bf16.msra.mxu0 %v384
  %608 = vmatprep.subr.bf16.mxu0 0
  %609 = vmatpush1.bf16.msra.mxu0 %v385
  %610 = vmatprep.subr.bf16.mxu0 0
  %611 = vmatpush1.bf16.msra.mxu0 %v386
  %612 = vmatprep.subr.bf16.mxu0 0
  %613 = vmatpush1.bf16.msra.mxu0 %v387
  %614 = vmatprep.subr.bf16.mxu0 0
  %615 = vmatpush1.bf16.msra.mxu0 %v388
  %616 = vmatprep.subr.bf16.mxu0 0
  %617 = vmatpush1.bf16.msra.mxu0 %v389
  %618 = vmatprep.subr.bf16.mxu0 0
  %619 = vmatpush1.bf16.msra.mxu0 %v390
  %620 = vmatprep.subr.bf16.mxu0 0
  %621 = vmatpush1.bf16.msra.mxu0 %v391
  %622 = vmatprep.subr.bf16.mxu0 0
  %623 = vmatpush1.bf16.msra.mxu0 %v392
  %624 = vmatprep.mubr.bf16.mxu0 %v529
  %625 = vmatmul.mubr.bf16.gmra.mrb[0].mxu0 %v528
  %v626 = vpop.f32.mrb[0].mxu0
  %v627 = vadd.f32 %v430, %v626
  %v628 = vpop.f32.mrb[0].mxu0
  %v629 = vpop.f32.mrb[0].mxu0
  %v630 = vadd.f32 %v430, %v629
  %v631 = vpop.f32.mrb[0].mxu0
  %632 = vmatprep.mubr.bf16.mxu0 %v531
  %633 = vmatmul.mubr.bf16.gmra.mrb[0].mxu0 %v530
  %v634 = vpop.f32.mrb[0].mxu0
  %v635 = vadd.f32 %v430, %v634
  %v636 = vpop.f32.mrb[0].mxu0
  %v637 = vpop.f32.mrb[0].mxu0
  %v638 = vadd.f32 %v430, %v637
  %v639 = vpop.f32.mrb[0].mxu0
  %640 = vmatprep.mubr.bf16.mxu0 %v533
  %641 = vmatmul.mubr.bf16.gmra.mrb[0].mxu0 %v532
  %v642 = vpop.f32.mrb[0].mxu0
  %v643 = vadd.f32 %v430, %v642
  %v644 = vpop.f32.mrb[0].mxu0
  %v645 = vpop.f32.mrb[0].mxu0
  %v646 = vadd.f32 %v430, %v645
  %v647 = vpop.f32.mrb[0].mxu0
  %648 = vmatprep.mubr.bf16.mxu0 %v535
  %649 = vmatmul.mubr.bf16.gmra.mrb[0].mxu0 %v534
  %v650 = vpop.f32.mrb[0].mxu0
  %v651 = vadd.f32 %v430, %v650
  %v652 = vpop.f32.mrb[0].mxu0
  %v653 = vpop.f32.mrb[0].mxu0
  %v654 = vadd.f32 %v430, %v653
  %v655 = vpop.f32.mrb[0].mxu0
  %656 = vmatprep.mubr.bf16.mxu0 %v537
  %657 = vmatmul.mubr.bf16.gmra.mrb[0].mxu0 %v536
  %v658 = vpop.f32.mrb[0].mxu0
  %v659 = vadd.f32 %v430, %v658
  %v660 = vpop.f32.mrb[0].mxu0
  %v661 = vpop.f32.mrb[0].mxu0
  %v662 = vadd.f32 %v430, %v661
  %v663 = vpop.f32.mrb[0].mxu0
  %664 = vmatprep.mubr.bf16.mxu0 %v539
  %665 = vmatmul.mubr.bf16.gmra.mrb[0].mxu0 %v538
  %v666 = vpop.f32.mrb[0].mxu0
  %v667 = vadd.f32 %v430, %v666
  %v668 = vpop.f32.mrb[0].mxu0
  %v669 = vpop.f32.mrb[0].mxu0
  %v670 = vadd.f32 %v430, %v669
  %v671 = vpop.f32.mrb[0].mxu0
  %672 = vmatprep.mubr.bf16.mxu0 %v541
  %673 = vmatmul.mubr.bf16.gmra.mrb[0].mxu0 %v540
  %v674 = vpop.f32.mrb[0].mxu0
  %v675 = vadd.f32 %v430, %v674
  %v676 = vpop.f32.mrb[0].mxu0
  %v677 = vpop.f32.mrb[0].mxu0
  %v678 = vadd.f32 %v430, %v677
  %v679 = vpop.f32.mrb[0].mxu0
  %680 = vmatprep.mubr.bf16.mxu0 %v543
  %681 = vmatmul.mubr.bf16.gmra.mrb[0].mxu0 %v542
  %v682 = vpop.f32.mrb[0].mxu0
  %v683 = vadd.f32 %v430, %v682
  %v684 = vpop.f32.mrb[0].mxu0
  %v685 = vpop.f32.mrb[0].mxu0
  %v686 = vadd.f32 %v430, %v685
  %v687 = vpop.f32.mrb[0].mxu0
  %688 = vmatprep.mubr.bf16.mxu0 %v545
  %689 = vmatmul.mubr.bf16.gmra.mrb[0].mxu0 %v544
  %v690 = vpop.f32.mrb[0].mxu0
  %v691 = vadd.f32 %v430, %v690
  %v692 = vpop.f32.mrb[0].mxu0
  %v693 = vpop.f32.mrb[0].mxu0
  %v694 = vadd.f32 %v430, %v693
  %v695 = vpop.f32.mrb[0].mxu0
  %696 = vmatprep.mubr.bf16.mxu0 %v547
  %697 = vmatmul.mubr.bf16.gmra.mrb[0].mxu0 %v546
  %v698 = vpop.f32.mrb[0].mxu0
  %v699 = vadd.f32 %v430, %v698
  %v700 = vpop.f32.mrb[0].mxu0
  %v701 = vpop.f32.mrb[0].mxu0
  %v702 = vadd.f32 %v430, %v701
  %v703 = vpop.f32.mrb[0].mxu0
  %704 = vmatprep.mubr.bf16.mxu0 %v549
  %705 = vmatmul.mubr.bf16.gmra.mrb[0].mxu0 %v548
  %v706 = vpop.f32.mrb[0].mxu0
  %v707 = vadd.f32 %v430, %v706
  %v708 = vpop.f32.mrb[0].mxu0
  %v709 = vpop.f32.mrb[0].mxu0
  %v710 = vadd.f32 %v430, %v709
  %v711 = vpop.f32.mrb[0].mxu0
  %712 = vmatprep.mubr.bf16.mxu0 %v551
  %713 = vmatmul.mubr.bf16.gmra.mrb[0].mxu0 %v550
  %v714 = vpop.f32.mrb[0].mxu0
  %v715 = vadd.f32 %v430, %v714
  %v716 = vpop.f32.mrb[0].mxu0
  %v717 = vpop.f32.mrb[0].mxu0
  %v718 = vadd.f32 %v430, %v717
  %v719 = vpop.f32.mrb[0].mxu0
  %720 = vmatprep.mubr.bf16.mxu0 %v553
  %721 = vmatmul.mubr.bf16.gmra.mrb[0].mxu0 %v552
  %v722 = vpop.f32.mrb[0].mxu0
  %v723 = vadd.f32 %v430, %v722
  %v724 = vpop.f32.mrb[0].mxu0
  %v725 = vpop.f32.mrb[0].mxu0
  %v726 = vadd.f32 %v430, %v725
  %v727 = vpop.f32.mrb[0].mxu0
  %728 = vmatprep.mubr.bf16.mxu0 %v555
  %729 = vmatmul.mubr.bf16.gmra.mrb[0].mxu0 %v554
  %v730 = vpop.f32.mrb[0].mxu0
  %v731 = vadd.f32 %v430, %v730
  %v732 = vpop.f32.mrb[0].mxu0
  %v733 = vpop.f32.mrb[0].mxu0
  %v734 = vadd.f32 %v430, %v733
  %v735 = vpop.f32.mrb[0].mxu0
  %736 = vmatprep.mubr.bf16.mxu0 %v557
  %737 = vmatmul.mubr.bf16.gmra.mrb[0].mxu0 %v556
  %v738 = vpop.f32.mrb[0].mxu0
  %v739 = vadd.f32 %v430, %v738
  %v740 = vpop.f32.mrb[0].mxu0
  %v741 = vpop.f32.mrb[0].mxu0
  %v742 = vadd.f32 %v430, %v741
  %v743 = vpop.f32.mrb[0].mxu0
  %744 = vmatprep.mubr.bf16.mxu0 %v559
  %745 = vmatmul.mubr.bf16.gmra.mrb[0].mxu0 %v558
  %v746 = vpop.f32.mrb[0].mxu0
  %v747 = vadd.f32 %v430, %v746
  %v748 = vpop.f32.mrb[0].mxu0
  %v749 = vpop.f32.mrb[0].mxu0
  %v750 = vadd.f32 %v430, %v749
  %v751 = vpop.f32.mrb[0].mxu0
  %752 = vdwg.mxu0
  %v753 = vmax.f32 %v627, 0.0
  %v754 = vmax.f32 %v630, 0.0
  %v755 = vmax.f32 %v635, 0.0
  %v756 = vmax.f32 %v638, 0.0
  %v757 = vmax.f32 %v643, 0.0
  %v758 = vmax.f32 %v646, 0.0
  %v759 = vmax.f32 %v651, 0.0
  %v760 = vmax.f32 %v654, 0.0
  %v761 = vmax.f32 %v659, 0.0
  %v762 = vmax.f32 %v662, 0.0
  %v763 = vmax.f32 %v667, 0.0
  %v764 = vmax.f32 %v670, 0.0
  %v765 = vmax.f32 %v675, 0.0
  %v766 = vmax.f32 %v678, 0.0
  %v767 = vmax.f32 %v683, 0.0
  %v768 = vmax.f32 %v686, 0.0
  %v769 = vmax.f32 %v691, 0.0
  %v770 = vmax.f32 %v694, 0.0
  %v771 = vmax.f32 %v699, 0.0
  %v772 = vmax.f32 %v702, 0.0
  %v773 = vmax.f32 %v707, 0.0
  %v774 = vmax.f32 %v710, 0.0
  %v775 = vmax.f32 %v715, 0.0
  %v776 = vmax.f32 %v718, 0.0
  %v777 = vmax.f32 %v723, 0.0
  %v778 = vmax.f32 %v726, 0.0
  %v779 = vmax.f32 %v731, 0.0
  %v780 = vmax.f32 %v734, 0.0
  %v781 = vmax.f32 %v739, 0.0
  %v782 = vmax.f32 %v742, 0.0
  %v783 = vmax.f32 %v747, 0.0
  %v784 = vmax.f32 %v750, 0.0
  %v785 = vpack.c.bf16 %v754, %v753
  %v786 = vpack.c.bf16 %v756, %v755
  %v787 = vpack.c.bf16 %v758, %v757
  %v788 = vpack.c.bf16 %v760, %v759
  %v789 = vpack.c.bf16 %v762, %v761
  %v790 = vpack.c.bf16 %v764, %v763
  %v791 = vpack.c.bf16 %v766, %v765
  %v792 = vpack.c.bf16 %v768, %v767
  %v793 = vpack.c.bf16 %v770, %v769
  %v794 = vpack.c.bf16 %v772, %v771
  %v795 = vpack.c.bf16 %v774, %v773
  %v796 = vpack.c.bf16 %v776, %v775
  %v797 = vpack.c.bf16 %v778, %v777
  %v798 = vpack.c.bf16 %v780, %v779
  %v799 = vpack.c.bf16 %v782, %v781
  %v800 = vpack.c.bf16 %v784, %v783
  %v801 = vld [vmem:[%s4] sm:$0xf]
  %v802 = vld [vmem:[%s4 + $0x4] sm:$0xf]
  %v803 = vld [vmem:[%s4 + $0x8] sm:$0xf]
  %v804 = vld [vmem:[%s4 + $0xc] sm:$0xf]
  %v805 = vld [vmem:[%s4 + $0x10] sm:$0xf]
  %v806 = vld [vmem:[%s4 + $0x14] sm:$0xf]
  %v807 = vld [vmem:[%s4 + $0x18] sm:$0xf]
  %v808 = vld [vmem:[%s4 + $0x1c] sm:$0xf]
  %v809 = vld [vmem:[%s4 + $0x20] sm:$0xf]
  %v810 = vld [vmem:[%s4 + $0x24] sm:$0xf]
  %v811 = vld [vmem:[%s4 + $0x28] sm:$0xf]
  %v812 = vld [vmem:[%s4 + $0x2c] sm:$0xf]
  %v813 = vld [vmem:[%s4 + $0x30] sm:$0xf]
  %v814 = vld [vmem:[%s4 + $0x34] sm:$0xf]
  %v815 = vld [vmem:[%s4 + $0x38] sm:$0xf]
  %v816 = vld [vmem:[%s4 + $0x3c] sm:$0xf]
  %v833 = vunpack.c.l.b16 %v801
  %v834 = vunpack.c.l.b16 %v802
  %v835 = vunpack.c.l.b16 %v803
  %v836 = vunpack.c.l.b16 %v804
  %v837 = vunpack.c.l.b16 %v805
  %v838 = vunpack.c.l.b16 %v806
  %v839 = vunpack.c.l.b16 %v807
  %v840 = vunpack.c.l.b16 %v808
  %v841 = vunpack.c.l.b16 %v809
  %v842 = vunpack.c.l.b16 %v810
  %v843 = vunpack.c.l.b16 %v811
  %v844 = vunpack.c.l.b16 %v812
  %v845 = vunpack.c.l.b16 %v813
  %v846 = vunpack.c.l.b16 %v814
  %v847 = vunpack.c.l.b16 %v815
  %v848 = vunpack.c.l.b16 %v816
  %v849 = vpack.c.b16 %v834, %v833
  %v850 = vpack.c.b16 %v836, %v835
  %v851 = vpack.c.b16 %v838, %v837
  %v852 = vpack.c.b16 %v840, %v839
  %v853 = vpack.c.b16 %v842, %v841
  %v854 = vpack.c.b16 %v844, %v843
  %v855 = vpack.c.b16 %v846, %v845
  %v856 = vpack.c.b16 %v848, %v847
  %865 = vmatprep.subr.bf16.mxu0 0
  %866 = vmatpush1.bf16.msra.mxu0 %v849
  %867 = vmatprep.subr.bf16.mxu0 0
  %868 = vmatpush1.bf16.msra.mxu0 %v850
  %869 = vmatprep.subr.bf16.mxu0 0
  %870 = vmatpush1.bf16.msra.mxu0 %v851
  %871 = vmatprep.subr.bf16.mxu0 0
  %872 = vmatpush1.bf16.msra.mxu0 %v852
  %873 = vmatprep.subr.bf16.mxu0 0
  %874 = vmatpush1.bf16.msra.mxu0 %v853
  %875 = vmatprep.subr.bf16.mxu0 0
  %876 = vmatpush1.bf16.msra.mxu0 %v854
  %877 = vmatprep.subr.bf16.mxu0 0
  %878 = vmatpush1.bf16.msra.mxu0 %v855
  %879 = vmatprep.subr.bf16.mxu0 0
  %880 = vmatpush1.bf16.msra.mxu0 %v856
  %881 = vmatprep.subr.bf16.mxu0 0
  %882 = vmatpush1.bf16.msra.mxu0 0
  %883 = vmatprep.subr.bf16.mxu0 0
  %884 = vmatpush1.bf16.msra.mxu0 0
  %885 = vmatprep.subr.bf16.mxu0 0
  %886 = vmatpush1.bf16.msra.mxu0 0
  %887 = vmatprep.subr.bf16.mxu0 0
  %888 = vmatpush1.bf16.msra.mxu0 0
  %889 = vmatprep.subr.bf16.mxu0 0
  %890 = vmatpush1.bf16.msra.mxu0 0
  %891 = vmatprep.subr.bf16.mxu0 0
  %892 = vmatpush1.bf16.msra.mxu0 0
  %893 = vmatprep.subr.bf16.mxu0 0
  %894 = vmatpush1.bf16.msra.mxu0 0
  %895 = vmatprep.subr.bf16.mxu0 0
  %896 = vmatpush1.bf16.msra.mxu0 0
  %897 = vmatprep.mubr.bf16.mxu0 0
  %898 = vmatmul.mubr.bf16.gmra.mrb[0].mxu0 %v785
  %v899 = vpop.f32.mrb[0].mxu0
  %v900 = vadd.f32 0.0, %v899
  %v901 = vpop.f32.mrb[0].mxu0
  %v902 = vpop.f32.mrb[0].mxu0
  %v903 = vadd.f32 0.0, %v902
  %v904 = vpop.f32.mrb[0].mxu0
  %905 = vmatprep.mubr.bf16.mxu0 0
  %906 = vmatmul.mubr.bf16.gmra.mrb[0].mxu0 %v786
  %v907 = vpop.f32.mrb[0].mxu0
  %v908 = vadd.f32 0.0, %v907
  %v909 = vpop.f32.mrb[0].mxu0
  %v910 = vpop.f32.mrb[0].mxu0
  %v911 = vadd.f32 0.0, %v910
  %v912 = vpop.f32.mrb[0].mxu0
  %913 = vmatprep.mubr.bf16.mxu0 0
  %914 = vmatmul.mubr.bf16.gmra.mrb[0].mxu0 %v787
  %v915 = vpop.f32.mrb[0].mxu0
  %v916 = vadd.f32 0.0, %v915
  %v917 = vpop.f32.mrb[0].mxu0
  %v918 = vpop.f32.mrb[0].mxu0
  %v919 = vadd.f32 0.0, %v918
  %v920 = vpop.f32.mrb[0].mxu0
  %921 = vmatprep.mubr.bf16.mxu0 0
  %922 = vmatmul.mubr.bf16.gmra.mrb[0].mxu0 %v788
  %v923 = vpop.f32.mrb[0].mxu0
  %v924 = vadd.f32 0.0, %v923
  %v925 = vpop.f32.mrb[0].mxu0
  %v926 = vpop.f32.mrb[0].mxu0
  %v927 = vadd.f32 0.0, %v926
  %v928 = vpop.f32.mrb[0].mxu0
  %929 = vmatprep.mubr.bf16.mxu0 0
  %930 = vmatmul.mubr.bf16.gmra.mrb[0].mxu0 %v789
  %v931 = vpop.f32.mrb[0].mxu0
  %v932 = vadd.f32 0.0, %v931
  %v933 = vpop.f32.mrb[0].mxu0
  %v934 = vpop.f32.mrb[0].mxu0
  %v935 = vadd.f32 0.0, %v934
  %v936 = vpop.f32.mrb[0].mxu0
  %937 = vmatprep.mubr.bf16.mxu0 0
  %938 = vmatmul.mubr.bf16.gmra.mrb[0].mxu0 %v790
  %v939 = vpop.f32.mrb[0].mxu0
  %v940 = vadd.f32 0.0, %v939
  %v941 = vpop.f32.mrb[0].mxu0
  %v942 = vpop.f32.mrb[0].mxu0
  %v943 = vadd.f32 0.0, %v942
  %v944 = vpop.f32.mrb[0].mxu0
  %945 = vmatprep.mubr.bf16.mxu0 0
  %946 = vmatmul.mubr.bf16.gmra.mrb[0].mxu0 %v791
  %v947 = vpop.f32.mrb[0].mxu0
  %v948 = vadd.f32 0.0, %v947
  %v949 = vpop.f32.mrb[0].mxu0
  %v950 = vpop.f32.mrb[0].mxu0
  %v951 = vadd.f32 0.0, %v950
  %v952 = vpop.f32.mrb[0].mxu0
  %953 = vmatprep.mubr.bf16.mxu0 0
  %954 = vmatmul.mubr.bf16.gmra.mrb[0].mxu0 %v792
  %v955 = vpop.f32.mrb[0].mxu0
  %v956 = vadd.f32 0.0, %v955
  %v957 = vpop.f32.mrb[0].mxu0
  %v958 = vpop.f32.mrb[0].mxu0
  %v959 = vadd.f32 0.0, %v958
  %v960 = vpop.f32.mrb[0].mxu0
  %961 = vmatprep.mubr.bf16.mxu0 0
  %962 = vmatmul.mubr.bf16.gmra.mrb[0].mxu0 %v793
  %v963 = vpop.f32.mrb[0].mxu0
  %v964 = vadd.f32 0.0, %v963
  %v965 = vpop.f32.mrb[0].mxu0
  %v966 = vpop.f32.mrb[0].mxu0
  %v967 = vadd.f32 0.0, %v966
  %v968 = vpop.f32.mrb[0].mxu0
  %969 = vmatprep.mubr.bf16.mxu0 0
  %970 = vmatmul.mubr.bf16.gmra.mrb[0].mxu0 %v794
  %v971 = vpop.f32.mrb[0].mxu0
  %v972 = vadd.f32 0.0, %v971
  %v973 = vpop.f32.mrb[0].mxu0
  %v974 = vpop.f32.mrb[0].mxu0
  %v975 = vadd.f32 0.0, %v974
  %v976 = vpop.f32.mrb[0].mxu0
  %977 = vmatprep.mubr.bf16.mxu0 0
  %978 = vmatmul.mubr.bf16.gmra.mrb[0].mxu0 %v795
  %v979 = vpop.f32.mrb[0].mxu0
  %v980 = vadd.f32 0.0, %v979
  %v981 = vpop.f32.mrb[0].mxu0
  %v982 = vpop.f32.mrb[0].mxu0
  %v983 = vadd.f32 0.0, %v982
  %v984 = vpop.f32.mrb[0].mxu0
  %985 = vmatprep.mubr.bf16.mxu0 0
  %986 = vmatmul.mubr.bf16.gmra.mrb[0].mxu0 %v796
  %v987 = vpop.f32.mrb[0].mxu0
  %v988 = vadd.f32 0.0, %v987
  %v989 = vpop.f32.mrb[0].mxu0
  %v990 = vpop.f32.mrb[0].mxu0
  %v991 = vadd.f32 0.0, %v990
  %v992 = vpop.f32.mrb[0].mxu0
  %993 = vmatprep.mubr.bf16.mxu0 0
  %994 = vmatmul.mubr.bf16.gmra.mrb[0].mxu0 %v797
  %v995 = vpop.f32.mrb[0].mxu0
  %v996 = vadd.f32 0.0, %v995
  %v997 = vpop.f32.mrb[0].mxu0
  %v998 = vpop.f32.mrb[0].mxu0
  %v999 = vadd.f32 0.0, %v998
  %v1000 = vpop.f32.mrb[0].mxu0
  %1001 = vmatprep.mubr.bf16.mxu0 0
  %1002 = vmatmul.mubr.bf16.gmra.mrb[0].mxu0 %v798
  %v1003 = vpop.f32.mrb[0].mxu0
  %v1004 = vadd.f32 0.0, %v1003
  %v1005 = vpop.f32.mrb[0].mxu0
  %v1006 = vpop.f32.mrb[0].mxu0
  %v1007 = vadd.f32 0.0, %v1006
  %v1008 = vpop.f32.mrb[0].mxu0
  %1009 = vmatprep.mubr.bf16.mxu0 0
  %1010 = vmatmul.mubr.bf16.gmra.mrb[0].mxu0 %v799
  %v1011 = vpop.f32.mrb[0].mxu0
  %v1012 = vadd.f32 0.0, %v1011
  %v1013 = vpop.f32.mrb[0].mxu0
  %v1014 = vpop.f32.mrb[0].mxu0
  %v1015 = vadd.f32 0.0, %v1014
  %v1016 = vpop.f32.mrb[0].mxu0
  %1017 = vmatprep.mubr.bf16.mxu0 0
  %1018 = vmatmul.mubr.bf16.gmra.mrb[0].mxu0 %v800
  %v1019 = vpop.f32.mrb[0].mxu0
  %v1020 = vadd.f32 0.0, %v1019
  %v1021 = vpop.f32.mrb[0].mxu0
  %v1022 = vpop.f32.mrb[0].mxu0
  %v1023 = vadd.f32 0.0, %v1022
  %v1024 = vpop.f32.mrb[0].mxu0
  %1025 = vdwg.mxu0
  %v1026 = vpack.c.bf16 %v903, %v900
  %v1027 = vpack.c.bf16 %v911, %v908
  %v1028 = vpack.c.bf16 %v919, %v916
  %v1029 = vpack.c.bf16 %v927, %v924
  %v1030 = vpack.c.bf16 %v935, %v932
  %v1031 = vpack.c.bf16 %v943, %v940
  %v1032 = vpack.c.bf16 %v951, %v948
  %v1033 = vpack.c.bf16 %v959, %v956
  %v1034 = vpack.c.bf16 %v967, %v964
  %v1035 = vpack.c.bf16 %v975, %v972
  %v1036 = vpack.c.bf16 %v983, %v980
  %v1037 = vpack.c.bf16 %v991, %v988
  %v1038 = vpack.c.bf16 %v999, %v996
  %v1039 = vpack.c.bf16 %v1007, %v1004
  %v1040 = vpack.c.bf16 %v1015, %v1012
  %v1041 = vpack.c.bf16 %v1023, %v1020
  %v1042 = vld [vmem:[%s5] sm:$0x1]
  %v1044 = vlaneseq
  %v1045 = vshrl.u32 %v1044, 7
  %v1046 = vsub.s32 0, %v1045
  %v1047 = vrot.slane %v1042, %v1046
  %1049 = vmatprep.subr.bf16.mxu0 0
  %1050 = vmatpush1.bf16.msra.mxu0 %v1026
  %1051 = vmatprep.subr.bf16.mxu0 0
  %1052 = vmatpush1.bf16.msra.mxu0 %v1027
  %1053 = vmatprep.subr.bf16.mxu0 0
  %1054 = vmatpush1.bf16.msra.mxu0 %v1028
  %1055 = vmatprep.subr.bf16.mxu0 0
  %1056 = vmatpush1.bf16.msra.mxu0 %v1029
  %1057 = vmatprep.subr.bf16.mxu0 0
  %1058 = vmatpush1.bf16.msra.mxu0 %v1030
  %1059 = vmatprep.subr.bf16.mxu0 0
  %1060 = vmatpush1.bf16.msra.mxu0 %v1031
  %1061 = vmatprep.subr.bf16.mxu0 0
  %1062 = vmatpush1.bf16.msra.mxu0 %v1032
  %1063 = vmatprep.subr.bf16.mxu0 0
  %1064 = vmatpush1.bf16.msra.mxu0 %v1033
  %1065 = vmatprep.subr.bf16.mxu0 0
  %1066 = vmatpush1.bf16.msra.mxu0 %v1034
  %1067 = vmatprep.subr.bf16.mxu0 0
  %1068 = vmatpush1.bf16.msra.mxu0 %v1035
  %1069 = vmatprep.subr.bf16.mxu0 0
  %1070 = vmatpush1.bf16.msra.mxu0 %v1036
  %1071 = vmatprep.subr.bf16.mxu0 0
  %1072 = vmatpush1.bf16.msra.mxu0 %v1037
  %1073 = vmatprep.subr.bf16.mxu0 0
  %1074 = vmatpush1.bf16.msra.mxu0 %v1038
  %1075 = vmatprep.subr.bf16.mxu0 0
  %1076 = vmatpush1.bf16.msra.mxu0 %v1039
  %1077 = vmatprep.subr.bf16.mxu0 0
  %1078 = vmatpush1.bf16.msra.mxu0 %v1040
  %1079 = vmatprep.subr.bf16.mxu0 0
  %1080 = vmatpush1.bf16.msra.mxu0 %v1041
  %1081 = vmatprep.mubr.bf16.mxu0 %v529
  %1082 = vmatmul.mubr.bf16.gmra.mrb[0].mxu0 %v528
  %v1083 = vpop.f32.mrb[0].mxu0
  %v1084 = vadd.f32 %v1047, %v1083
  %v1085 = vpop.f32.mrb[0].mxu0
  %v1086 = vpop.f32.mrb[0].mxu0
  %v1087 = vadd.f32 %v1047, %v1086
  %v1088 = vpop.f32.mrb[0].mxu0
  %1089 = vmatprep.mubr.bf16.mxu0 %v531
  %1090 = vmatmul.mubr.bf16.gmra.mrb[0].mxu0 %v530
  %v1091 = vpop.f32.mrb[0].mxu0
  %v1092 = vadd.f32 %v1047, %v1091
  %v1093 = vpop.f32.mrb[0].mxu0
  %v1094 = vpop.f32.mrb[0].mxu0
  %v1095 = vadd.f32 %v1047, %v1094
  %v1096 = vpop.f32.mrb[0].mxu0
  %1097 = vmatprep.mubr.bf16.mxu0 %v533
  %1098 = vmatmul.mubr.bf16.gmra.mrb[0].mxu0 %v532
  %v1099 = vpop.f32.mrb[0].mxu0
  %v1100 = vadd.f32 %v1047, %v1099
  %v1101 = vpop.f32.mrb[0].mxu0
  %v1102 = vpop.f32.mrb[0].mxu0
  %v1103 = vadd.f32 %v1047, %v1102
  %v1104 = vpop.f32.mrb[0].mxu0
  %1105 = vmatprep.mubr.bf16.mxu0 %v535
  %1106 = vmatmul.mubr.bf16.gmra.mrb[0].mxu0 %v534
  %v1107 = vpop.f32.mrb[0].mxu0
  %v1108 = vadd.f32 %v1047, %v1107
  %v1109 = vpop.f32.mrb[0].mxu0
  %v1110 = vpop.f32.mrb[0].mxu0
  %v1111 = vadd.f32 %v1047, %v1110
  %v1112 = vpop.f32.mrb[0].mxu0
  %1113 = vmatprep.mubr.bf16.mxu0 %v537
  %1114 = vmatmul.mubr.bf16.gmra.mrb[0].mxu0 %v536
  %v1115 = vpop.f32.mrb[0].mxu0
  %v1116 = vadd.f32 %v1047, %v1115
  %v1117 = vpop.f32.mrb[0].mxu0
  %v1118 = vpop.f32.mrb[0].mxu0
  %v1119 = vadd.f32 %v1047, %v1118
  %v1120 = vpop.f32.mrb[0].mxu0
  %1121 = vmatprep.mubr.bf16.mxu0 %v539
  %1122 = vmatmul.mubr.bf16.gmra.mrb[0].mxu0 %v538
  %v1123 = vpop.f32.mrb[0].mxu0
  %v1124 = vadd.f32 %v1047, %v1123
  %v1125 = vpop.f32.mrb[0].mxu0
  %v1126 = vpop.f32.mrb[0].mxu0
  %v1127 = vadd.f32 %v1047, %v1126
  %v1128 = vpop.f32.mrb[0].mxu0
  %1129 = vmatprep.mubr.bf16.mxu0 %v541
  %1130 = vmatmul.mubr.bf16.gmra.mrb[0].mxu0 %v540
  %v1131 = vpop.f32.mrb[0].mxu0
  %v1132 = vadd.f32 %v1047, %v1131
  %v1133 = vpop.f32.mrb[0].mxu0
  %v1134 = vpop.f32.mrb[0].mxu0
  %v1135 = vadd.f32 %v1047, %v1134
  %v1136 = vpop.f32.mrb[0].mxu0
  %1137 = vmatprep.mubr.bf16.mxu0 %v543
  %1138 = vmatmul.mubr.bf16.gmra.mrb[0].mxu0 %v542
  %v1139 = vpop.f32.mrb[0].mxu0
  %v1140 = vadd.f32 %v1047, %v1139
  %v1141 = vpop.f32.mrb[0].mxu0
  %v1142 = vpop.f32.mrb[0].mxu0
  %v1143 = vadd.f32 %v1047, %v1142
  %v1144 = vpop.f32.mrb[0].mxu0
  %1145 = vmatprep.mubr.bf16.mxu0 %v545
  %1146 = vmatmul.mubr.bf16.gmra.mrb[0].mxu0 %v544
  %v1147 = vpop.f32.mrb[0].mxu0
  %v1148 = vadd.f32 %v1047, %v1147
  %v1149 = vpop.f32.mrb[0].mxu0
  %v1150 = vpop.f32.mrb[0].mxu0
  %v1151 = vadd.f32 %v1047, %v1150
  %v1152 = vpop.f32.mrb[0].mxu0
  %1153 = vmatprep.mubr.bf16.mxu0 %v547
  %1154 = vmatmul.mubr.bf16.gmra.mrb[0].mxu0 %v546
  %v1155 = vpop.f32.mrb[0].mxu0
  %v1156 = vadd.f32 %v1047, %v1155
  %v1157 = vpop.f32.mrb[0].mxu0
  %v1158 = vpop.f32.mrb[0].mxu0
  %v1159 = vadd.f32 %v1047, %v1158
  %v1160 = vpop.f32.mrb[0].mxu0
  %1161 = vmatprep.mubr.bf16.mxu0 %v549
  %1162 = vmatmul.mubr.bf16.gmra.mrb[0].mxu0 %v548
  %v1163 = vpop.f32.mrb[0].mxu0
  %v1164 = vadd.f32 %v1047, %v1163
  %v1165 = vpop.f32.mrb[0].mxu0
  %v1166 = vpop.f32.mrb[0].mxu0
  %v1167 = vadd.f32 %v1047, %v1166
  %v1168 = vpop.f32.mrb[0].mxu0
  %1169 = vmatprep.mubr.bf16.mxu0 %v551
  %1170 = vmatmul.mubr.bf16.gmra.mrb[0].mxu0 %v550
  %v1171 = vpop.f32.mrb[0].mxu0
  %v1172 = vadd.f32 %v1047, %v1171
  %v1173 = vpop.f32.mrb[0].mxu0
  %v1174 = vpop.f32.mrb[0].mxu0
  %v1175 = vadd.f32 %v1047, %v1174
  %v1176 = vpop.f32.mrb[0].mxu0
  %1177 = vmatprep.mubr.bf16.mxu0 %v553
  %1178 = vmatmul.mubr.bf16.gmra.mrb[0].mxu0 %v552
  %v1179 = vpop.f32.mrb[0].mxu0
  %v1180 = vadd.f32 %v1047, %v1179
  %v1181 = vpop.f32.mrb[0].mxu0
  %v1182 = vpop.f32.mrb[0].mxu0
  %v1183 = vadd.f32 %v1047, %v1182
  %v1184 = vpop.f32.mrb[0].mxu0
  %1185 = vmatprep.mubr.bf16.mxu0 %v555
  %1186 = vmatmul.mubr.bf16.gmra.mrb[0].mxu0 %v554
  %v1187 = vpop.f32.mrb[0].mxu0
  %v1188 = vadd.f32 %v1047, %v1187
  %v1189 = vpop.f32.mrb[0].mxu0
  %v1190 = vpop.f32.mrb[0].mxu0
  %v1191 = vadd.f32 %v1047, %v1190
  %v1192 = vpop.f32.mrb[0].mxu0
  %1193 = vmatprep.mubr.bf16.mxu0 %v557
  %1194 = vmatmul.mubr.bf16.gmra.mrb[0].mxu0 %v556
  %v1195 = vpop.f32.mrb[0].mxu0
  %v1196 = vadd.f32 %v1047, %v1195
  %v1197 = vpop.f32.mrb[0].mxu0
  %v1198 = vpop.f32.mrb[0].mxu0
  %v1199 = vadd.f32 %v1047, %v1198
  %v1200 = vpop.f32.mrb[0].mxu0
  %1201 = vmatprep.mubr.bf16.mxu0 %v559
  %1202 = vmatmul.mubr.bf16.gmra.mrb[0].mxu0 %v558
  %v1203 = vpop.f32.mrb[0].mxu0
  %v1204 = vadd.f32 %v1047, %v1203
  %v1205 = vpop.f32.mrb[0].mxu0
  %v1206 = vpop.f32.mrb[0].mxu0
  %v1207 = vadd.f32 %v1047, %v1206
  %v1208 = vpop.f32.mrb[0].mxu0
  %1209 = vdwg.mxu0
  %1210 = vst [vmem:[%s6] sm:$0xff] %v1084
  %1211 = vst [vmem:[%s6 + $0x8] sm:$0xff] %v1087
  %1212 = vst [vmem:[%s6 + $0x10] sm:$0xff] %v1092
  %1213 = vst [vmem:[%s6 + $0x18] sm:$0xff] %v1095
  %1214 = vst [vmem:[%s6 + $0x20] sm:$0xff] %v1100
  %1215 = vst [vmem:[%s6 + $0x28] sm:$0xff] %v1103
  %1216 = vst [vmem:[%s6 + $0x30] sm:$0xff] %v1108
  %1217 = vst [vmem:[%s6 + $0x38] sm:$0xff] %v1111
  %1218 = vst [vmem:[%s6 + $0x40] sm:$0xff] %v1116
  %1219 = vst [vmem:[%s6 + $0x48] sm:$0xff] %v1119
  %1220 = vst [vmem:[%s6 + $0x50] sm:$0xff] %v1124
  %1221 = vst [vmem:[%s6 + $0x58] sm:$0xff] %v1127
  %1222 = vst [vmem:[%s6 + $0x60] sm:$0xff] %v1132
  %1223 = vst [vmem:[%s6 + $0x68] sm:$0xff] %v1135
  %1224 = vst [vmem:[%s6 + $0x70] sm:$0xff] %v1140
  %1225 = vst [vmem:[%s6 + $0x78] sm:$0xff] %v1143
  %1226 = vst [vmem:[%s6 + $0x80] sm:$0xff] %v1148
  %1227 = vst [vmem:[%s6 + $0x88] sm:$0xff] %v1151
  %1228 = vst [vmem:[%s6 + $0x90] sm:$0xff] %v1156
  %1229 = vst [vmem:[%s6 + $0x98] sm:$0xff] %v1159
  %1230 = vst [vmem:[%s6 + $0xa0] sm:$0xff] %v1164
  %1231 = vst [vmem:[%s6 + $0xa8] sm:$0xff] %v1167
  %1232 = vst [vmem:[%s6 + $0xb0] sm:$0xff] %v1172
  %1233 = vst [vmem:[%s6 + $0xb8] sm:$0xff] %v1175
  %1234 = vst [vmem:[%s6 + $0xc0] sm:$0xff] %v1180
  %1235 = vst [vmem:[%s6 + $0xc8] sm:$0xff] %v1183
  %1236 = vst [vmem:[%s6 + $0xd0] sm:$0xff] %v1188
  %1237 = vst [vmem:[%s6 + $0xd8] sm:$0xff] %v1191
  %1238 = vst [vmem:[%s6 + $0xe0] sm:$0xff] %v1196
  %1239 = vst [vmem:[%s6 + $0xe8] sm:$0xff] %v1199
  %1240 = vst [vmem:[%s6 + $0xf0] sm:$0xff] %v1204
  %1241 = vst [vmem:[%s6 + $0xf8] sm:$0xff] %v1207
  // Predicated region
  $region26: #{encoder_forward.1} parent=0 // pred_check
    _
  $region27: #{encoder_forward.1} parent=0 // pred_check_branch
    %1243 = sbr.rel (0) target = $region29
  $region28: #{encoder_forward.1} parent=0 // pred_region
    _
  $region29: #{encoder_forward.1} parent=0 // pred_fallthru
    _
  // Predicated region
  $region30: #{encoder_forward.1} parent=0 // pred_check
    _
  $region31: #{encoder_forward.1} parent=0 // pred_check_branch
    %1245 = sbr.rel (0) target = $region33
  $region32: #{encoder_forward.1} parent=0 // pred_region
    _
  $region33: #{encoder_forward.1} parent=0 // pred_fallthru
    _

</llo_original>
